<compile_context>
chip_gen: v7x
topology: tpu7x:2x2x1
jax: 0.10.0
libtpu: 0.0.40
codegen_flags: <defaults>
</compile_context>

<pallas_src>
import jax
import jax.numpy as jnp
from jax.experimental import pallas as pl
from jax.experimental.pallas import tpu as pltpu

HDIM = 512            # hidden width of lin1 (fixed inside the PyTorch module)
BN_EPS = 1e-5         # nn.BatchNorm1d default
LEAKY_SLOPE = 0.01    # F.leaky_relu default negative_slope


def _round_up(x, m):
    return ((x + m - 1) // m) * m


def _pick_batch_tile(batch):
    """Generation-aware batch (sublane / MXU-row) tile selection."""
    kind = ""
    try:
        kind = (jax.devices()[0].device_kind or "").lower()
    except Exception:
        pass
    is_v5e = ("v5 lite" in kind) or ("v5e" in kind) or ("v5litepod" in kind)
    is_v7 = ("7x" in kind) or ("v7" in kind)

    if batch >= 256 and not is_v5e:
        tm = 256                        # v6e/v7x MXU is 2x256x256
    elif batch >= 128:
        tm = 128                        # v5e MXU is 4x128x128
    else:
        tm = _round_up(batch, 8)

    if is_v7 and batch >= 16:
        # Ensure >= 2 parallel batch tiles so the grid shards across both TCs.
        tm = min(tm, max(_round_up((batch + 1) // 2, 16), 16))
    return max(tm, 8)


def _head_kernel(x_ref, w1_ref, s1_ref, t1_ref, w2_ref, s2_ref, t2_ref, o_ref):
    """out = s2 * ( leaky_relu( s1*(x @ W1) + t1 ) @ W2 ) + t2.

    Bias + eval-mode BatchNorm are pre-folded into per-feature (scale, shift).
    The whole K (pooled-channel) reduction is a single resident MXU dot; the
    tiny 512 -> out_pad matmul and the epilogue run in the same grid step.
    """
    h1 = jnp.dot(x_ref[...], w1_ref[...], preferred_element_type=jnp.float32)
    h1 = h1 * s1_ref[...] + t1_ref[...]                   # bias + BN1 folded
    h1 = jnp.where(h1 > 0, h1, LEAKY_SLOPE * h1)          # leaky_relu
    # TODO(synk): dropout(p=0.1) is identity in inference-mode forward.
    h2 = jnp.dot(h1.astype(w2_ref.dtype), w2_ref[...],
                 preferred_element_type=jnp.float32)
    o_ref[...] = (h2 * s2_ref[...] + t2_ref[...]).astype(o_ref.dtype)


def prepare_head_params(params, out_dim):
    """One-off prep at parameter-load time: fold BN, pad, cast to bf16."""
    C = params["w1"].shape[0]
    C_pad = _round_up(max(C, 128), 128)
    out_pad = _round_up(max(out_dim, 128), 128)

    s1 = params["bn1_gamma"] / jnp.sqrt(params["bn1_var"] + BN_EPS)
    t1 = params["b1"] * s1 + (params["bn1_beta"] - params["bn1_mean"] * s1)
    s2 = params["bn2_gamma"] / jnp.sqrt(params["bn2_var"] + BN_EPS)
    t2 = params["b2"] * s2 + (params["bn2_beta"] - params["bn2_mean"] * s2)

    w1 = params["w1"].astype(jnp.float32)
    if C_pad != C:
        w1 = jnp.pad(w1, ((0, C_pad - C), (0, 0)))
    w2p = jnp.zeros((HDIM, out_pad), jnp.float32).at[:, :out_dim].set(
        params["w2"].astype(jnp.float32))
    s2p = jnp.ones((out_pad,), jnp.float32).at[:out_dim].set(s2)
    t2p = jnp.zeros((out_pad,), jnp.float32).at[:out_dim].set(t2)

    return dict(
        w1=w1.astype(jnp.bfloat16),                       # (C_pad, HDIM) bf16
        w2=w2p.astype(jnp.bfloat16),                      # (HDIM, out_pad) bf16
        s1=s1.reshape(1, HDIM).astype(jnp.float32),
        t1=t1.reshape(1, HDIM).astype(jnp.float32),
        s2=s2p.reshape(1, out_pad),
        t2=t2p.reshape(1, out_pad),
        C=C, C_pad=C_pad, out_dim=out_dim, out_pad=out_pad,
    )


def pretrained_cnn_head_forward(feat_nchw, prepped, out_dtype=jnp.bfloat16):
    """PretrainedCNN.forward after base_model.features (inference mode)."""
    B = feat_nchw.shape[0]
    C, C_pad = prepped["C"], prepped["C_pad"]
    out_dim, out_pad = prepped["out_dim"], prepped["out_pad"]
    assert feat_nchw.shape[1] == C

    # --- global sum pooling over spatial dims, emitted directly as bf16 ------
    # (single fused XLA reduce + cast; f32 accumulation for the spatial sum).
    x = jnp.sum(feat_nchw.astype(jnp.float32), axis=(-1, -2)).astype(jnp.bfloat16)

    # --- batch tiling; pad only if actually needed ---------------------------
    tm = _pick_batch_tile(B)
    B_pad = _round_up(B, tm)
    if (B_pad != B) or (C_pad != C):
        x = jnp.pad(x, ((0, B_pad - B), (0, C_pad - C)))
    n_b = B_pad // tm

    # --- VMEM budget from the actual (double-buffered) block sizes -----------
    out_itemsize = jnp.dtype(out_dtype).itemsize
    block_bytes = (tm * C_pad * 2 + C_pad * HDIM * 2 + HDIM * out_pad * 2
                   + 2 * HDIM * 4 + 2 * out_pad * 4 + tm * out_pad * out_itemsize)
    vmem_limit = min(2 * block_bytes + (4 << 20), 64 << 20)

    flops = 2 * B_pad * C_pad * HDIM + 2 * B_pad * HDIM * out_pad
    bytes_accessed = (2 * (B_pad * C_pad + C_pad * HDIM + HDIM * out_pad)  # bf16 in
                      + 4 * 2 * (HDIM + out_pad)                          # f32 scale/shift
                      + out_itemsize * B_pad * out_pad)                    # out

    out = pl.pallas_call(
        _head_kernel,
        out_shape=jax.ShapeDtypeStruct((B_pad, out_pad), out_dtype),
        grid_spec=pltpu.PrefetchScalarGridSpec(
            num_scalar_prefetch=0,
            grid=(n_b,),                                          # batch only
            in_specs=[
                pl.BlockSpec((tm, C_pad), lambda i: (i, 0)),      # pooled x tile
                pl.BlockSpec((C_pad, HDIM), lambda i: (0, 0)),    # W1 (resident)
                pl.BlockSpec((1, HDIM), lambda i: (0, 0)),        # scale1
                pl.BlockSpec((1, HDIM), lambda i: (0, 0)),        # shift1
                pl.BlockSpec((HDIM, out_pad), lambda i: (0, 0)),  # W2 (resident)
                pl.BlockSpec((1, out_pad), lambda i: (0, 0)),     # scale2
                pl.BlockSpec((1, out_pad), lambda i: (0, 0)),     # shift2
            ],
            out_specs=pl.BlockSpec((tm, out_pad), lambda i: (i, 0)),
        ),
        compiler_params=pltpu.CompilerParams(
            dimension_semantics=("parallel",),
            vmem_limit_bytes=int(vmem_limit),
        ),
        cost_estimate=pl.CostEstimate(
            flops=flops, transcendentals=0, bytes_accessed=bytes_accessed),
    )(x, prepped["w1"], prepped["s1"], prepped["t1"],
      prepped["w2"], prepped["s2"], prepped["t2"])

    return out[:B, :out_dim]


if __name__ == "__main__":
    key = jax.random.PRNGKey(0)
    keys = jax.random.split(key, 12)

    # Small shapes standing in for the backbone feature map + head params.
    B, C, H, W = 2, 32, 8, 8
    OUT_DIM = 186

    feat = jax.random.normal(keys[0], (B, C, H, W), jnp.float32)

    params = dict(
        w1=jax.random.normal(keys[1], (C, HDIM), jnp.float32) * 0.02,
        b1=jax.random.normal(keys[2], (HDIM,), jnp.float32) * 0.01,
        bn1_gamma=1.0 + 0.1 * jax.random.normal(keys[3], (HDIM,), jnp.float32),
        bn1_beta=0.1 * jax.random.normal(keys[4], (HDIM,), jnp.float32),
        bn1_mean=0.05 * jax.random.normal(keys[5], (HDIM,), jnp.float32),
        bn1_var=1.0 + 0.1 * jax.random.uniform(keys[6], (HDIM,), jnp.float32),
        w2=jax.random.normal(keys[7], (HDIM, OUT_DIM), jnp.float32) * 0.02,
        b2=jax.random.normal(keys[8], (OUT_DIM,), jnp.float32) * 0.01,
        bn2_gamma=1.0 + 0.1 * jax.random.normal(keys[9], (OUT_DIM,), jnp.float32),
        bn2_beta=0.1 * jax.random.normal(keys[10], (OUT_DIM,), jnp.float32),
        bn2_mean=0.05 * jax.random.normal(keys[11], (OUT_DIM,), jnp.float32),
        bn2_var=jnp.ones((OUT_DIM,), jnp.float32),
    )

    # One-off parameter prep (hoisted out of the forward path).
    prepped = prepare_head_params(params, OUT_DIM)
    prepped = jax.tree_util.tree_map(
        lambda v: jax.block_until_ready(v) if isinstance(v, jax.Array) else v,
        prepped)

    out = pretrained_cnn_head_forward(feat, prepped)
    out = jax.block_until_ready(out)
    assert out.shape == (B, OUT_DIM)

    # --- plain-JAX reference mirroring the kernel's bf16-operand / f32-acc math
    x_pooled = jnp.sum(feat.astype(jnp.float32), axis=(-1, -2))
    s1 = params["bn1_gamma"] / jnp.sqrt(params["bn1_var"] + BN_EPS)
    t1 = params["b1"] * s1 + (params["bn1_beta"] - params["bn1_mean"] * s1)
    s2 = params["bn2_gamma"] / jnp.sqrt(params["bn2_var"] + BN_EPS)
    t2 = params["b2"] * s2 + (params["bn2_beta"] - params["bn2_mean"] * s2)

    xb = x_pooled.astype(jnp.bfloat16).astype(jnp.float32)
    w1b = params["w1"].astype(jnp.bfloat16).astype(jnp.float32)
    w2b = params["w2"].astype(jnp.bfloat16).astype(jnp.float32)
    h1 = xb @ w1b * s1 + t1
    h1 = jnp.where(h1 > 0, h1, LEAKY_SLOPE * h1)
    h1b = h1.astype(jnp.bfloat16).astype(jnp.float32)
    ref = h1b @ w2b * s2 + t2

    out_f32 = out.astype(jnp.float32)
    assert jnp.allclose(out_f32, ref, atol=2e-2, rtol=2e-2), (
        float(jnp.max(jnp.abs(out_f32 - ref))))

    print("KERNEL_OK")
</pallas_src>

<mosaic_0001>
module attributes {stable_mosaic.version = 11 : i64} {
  func.func @_head_kernel(%arg0: i32, %arg1: memref<8x128xbf16, #tpu.memory_space<vmem>>, %arg2: memref<128x512xbf16, #tpu.memory_space<vmem>>, %arg3: memref<1x512xf32, #tpu.memory_space<vmem>>, %arg4: memref<1x512xf32, #tpu.memory_space<vmem>>, %arg5: memref<512x256xbf16, #tpu.memory_space<vmem>>, %arg6: memref<1x256xf32, #tpu.memory_space<vmem>>, %arg7: memref<1x256xf32, #tpu.memory_space<vmem>>, %arg8: memref<8x256xbf16, #tpu.memory_space<vmem>>) attributes {dimension_semantics = [#tpu.dimension_semantics<parallel>], iteration_bounds = array<i64: 1>, scalar_prefetch = 0 : i64, scratch_operands = 0 : i64, tpu.core_type = #tpu.core_type<tc>, window_params = [{transform_indices = @transform_0, window_bounds = array<i64: 8, 128>}, {pipeline_mode = #tpu.pipeline_mode<synchronous>, transform_indices = @transform_1, window_bounds = array<i64: 128, 512>}, {pipeline_mode = #tpu.pipeline_mode<synchronous>, transform_indices = @transform_2, window_bounds = array<i64: 1, 512>}, {pipeline_mode = #tpu.pipeline_mode<synchronous>, transform_indices = @transform_3, window_bounds = array<i64: 1, 512>}, {pipeline_mode = #tpu.pipeline_mode<synchronous>, transform_indices = @transform_4, window_bounds = array<i64: 512, 256>}, {pipeline_mode = #tpu.pipeline_mode<synchronous>, transform_indices = @transform_5, window_bounds = array<i64: 1, 256>}, {pipeline_mode = #tpu.pipeline_mode<synchronous>, transform_indices = @transform_6, window_bounds = array<i64: 1, 256>}, {transform_indices = @transform_7, window_bounds = array<i64: 8, 256>}]} {
    %c0 = arith.constant 0 : index
    %c0_0 = arith.constant 0 : index
    %0 = vector.load %arg1[%c0, %c0_0] : memref<8x128xbf16, #tpu.memory_space<vmem>>, vector<8x128xbf16>
    %c0_1 = arith.constant 0 : index
    %c0_2 = arith.constant 0 : index
    %1 = vector.load %arg2[%c0_1, %c0_2] : memref<128x512xbf16, #tpu.memory_space<vmem>>, vector<128x512xbf16>
    %cst = arith.constant dense<0.000000e+00> : vector<8x512xf32>
    %2 = tpu.matmul %0, %1, %cst {dimension_numbers = #tpu.dot_dimension_numbers<[1], [0], [0], [1], [0, 0, 1, 1], [], []>} : vector<8x128xbf16>, vector<128x512xbf16>, vector<8x512xf32> -> vector<8x512xf32>
    %c0_3 = arith.constant 0 : index
    %c0_4 = arith.constant 0 : index
    %3 = vector.load %arg3[%c0_3, %c0_4] : memref<1x512xf32, #tpu.memory_space<vmem>>, vector<1x512xf32>
    %4 = vector.broadcast %3 : vector<1x512xf32> to vector<8x512xf32>
    %5 = arith.mulf %2, %4 : vector<8x512xf32>
    %c0_5 = arith.constant 0 : index
    %c0_6 = arith.constant 0 : index
    %6 = vector.load %arg4[%c0_5, %c0_6] : memref<1x512xf32, #tpu.memory_space<vmem>>, vector<1x512xf32>
    %7 = vector.broadcast %6 : vector<1x512xf32> to vector<8x512xf32>
    %8 = arith.addf %5, %7 : vector<8x512xf32>
    %cst_7 = arith.constant 0.000000e+00 : f32
    %9 = vector.broadcast %cst_7 : f32 to vector<8x512xf32>
    %10 = arith.cmpf ogt, %8, %9 : vector<8x512xf32>
    %cst_8 = arith.constant 0.00999999977 : f32
    %11 = vector.broadcast %cst_8 : f32 to vector<8x512xf32>
    %12 = arith.mulf %11, %8 : vector<8x512xf32>
    %13 = arith.select %10, %8, %12 : vector<8x512xi1>, vector<8x512xf32>
    %14 = arith.truncf %13 : vector<8x512xf32> to vector<8x512xbf16>
    %c0_9 = arith.constant 0 : index
    %c0_10 = arith.constant 0 : index
    %15 = vector.load %arg5[%c0_9, %c0_10] : memref<512x256xbf16, #tpu.memory_space<vmem>>, vector<512x256xbf16>
    %cst_11 = arith.constant dense<0.000000e+00> : vector<8x256xf32>
    %16 = tpu.matmul %14, %15, %cst_11 {dimension_numbers = #tpu.dot_dimension_numbers<[1], [0], [0], [1], [0, 0, 1, 1], [], []>} : vector<8x512xbf16>, vector<512x256xbf16>, vector<8x256xf32> -> vector<8x256xf32>
    %c0_12 = arith.constant 0 : index
    %c0_13 = arith.constant 0 : index
    %17 = vector.load %arg6[%c0_12, %c0_13] : memref<1x256xf32, #tpu.memory_space<vmem>>, vector<1x256xf32>
    %18 = vector.broadcast %17 : vector<1x256xf32> to vector<8x256xf32>
    %19 = arith.mulf %16, %18 : vector<8x256xf32>
    %c0_14 = arith.constant 0 : index
    %c0_15 = arith.constant 0 : index
    %20 = vector.load %arg7[%c0_14, %c0_15] : memref<1x256xf32, #tpu.memory_space<vmem>>, vector<1x256xf32>
    %21 = vector.broadcast %20 : vector<1x256xf32> to vector<8x256xf32>
    %22 = arith.addf %19, %21 : vector<8x256xf32>
    %23 = arith.truncf %22 : vector<8x256xf32> to vector<8x256xbf16>
    %c0_16 = arith.constant 0 : index
    %c0_17 = arith.constant 0 : index
    %24 = vector.load %arg8[%c0_16, %c0_17] : memref<8x256xbf16, #tpu.memory_space<vmem>>, vector<8x256xbf16>
    tpu.vector_store %arg8[%c0_16, %c0_17], %23 {strides = array<i32>} : memref<8x256xbf16, #tpu.memory_space<vmem>>, vector<8x256xbf16>,
    return
  }
  func.func @transform_0(%arg0: i32) -> (i32, i32) {
    %c0_i32 = arith.constant 0 : i32
    %c0_i32_0 = arith.constant 0 : i32
    return %arg0, %c0_i32 : i32, i32
  }
  func.func @transform_1(%arg0: i32) -> (i32, i32) {
    %c0_i32 = arith.constant 0 : i32
    %c0_i32_0 = arith.constant 0 : i32
    %c0_i32_1 = arith.constant 0 : i32
    return %c0_i32, %c0_i32_0 : i32, i32
  }
  func.func @transform_2(%arg0: i32) -> (i32, i32) {
    %c0_i32 = arith.constant 0 : i32
    %c0_i32_0 = arith.constant 0 : i32
    %c0_i32_1 = arith.constant 0 : i32
    return %c0_i32, %c0_i32_0 : i32, i32
  }
  func.func @transform_3(%arg0: i32) -> (i32, i32) {
    %c0_i32 = arith.constant 0 : i32
    %c0_i32_0 = arith.constant 0 : i32
    %c0_i32_1 = arith.constant 0 : i32
    return %c0_i32, %c0_i32_0 : i32, i32
  }
  func.func @transform_4(%arg0: i32) -> (i32, i32) {
    %c0_i32 = arith.constant 0 : i32
    %c0_i32_0 = arith.constant 0 : i32
    %c0_i32_1 = arith.constant 0 : i32
    return %c0_i32, %c0_i32_0 : i32, i32
  }
  func.func @transform_5(%arg0: i32) -> (i32, i32) {
    %c0_i32 = arith.constant 0 : i32
    %c0_i32_0 = arith.constant 0 : i32
    %c0_i32_1 = arith.constant 0 : i32
    return %c0_i32, %c0_i32_0 : i32, i32
  }
  func.func @transform_6(%arg0: i32) -> (i32, i32) {
    %c0_i32 = arith.constant 0 : i32
    %c0_i32_0 = arith.constant 0 : i32
    %c0_i32_1 = arith.constant 0 : i32
    return %c0_i32, %c0_i32_0 : i32, i32
  }
  func.func @transform_7(%arg0: i32) -> (i32, i32) {
    %c0_i32 = arith.constant 0 : i32
    %c0_i32_0 = arith.constant 0 : i32
    return %arg0, %c0_i32 : i32, i32
  }
}

</mosaic_0001>

<llo_original>
// kernel: tpu_custom_call.1
$region0: #{tpu_custom_call.1}
  #allocation0 [shape = 'u32[]', space=smem, size = 0x4, offset = 0x4, fixed_abs, tag = 'smem constant byte address 0x4 - core index']
  #allocation1 [shape = 'u32[144,128]{1,0:T(1,128)}', space=vmem, size = 0x12000, scoped, tag = 'internal scratch']
  %s0 = inlined_call_operand.hbm [shape: bf16[8,128], index: 0, kind: input, shape index: {}]
  %s1 = inlined_call_operand.hbm [shape: bf16[128,512], index: 1, kind: input, shape index: {}]
  %s2 = inlined_call_operand.vmem [shape: f32[1,512], index: 2, kind: input, shape index: {}]
  %s3 = inlined_call_operand.vmem [shape: f32[1,512], index: 3, kind: input, shape index: {}]
  %s4 = inlined_call_operand.hbm [shape: bf16[512,256], index: 4, kind: input, shape index: {}]
  %s5 = inlined_call_operand.vmem [shape: f32[1,256], index: 5, kind: input, shape index: {}]
  %s6 = inlined_call_operand.vmem [shape: f32[1,256], index: 6, kind: input, shape index: {}]
  %s7 = inlined_call_operand.hbm [shape: bf16[8,256], index: 7, kind: output, shape index: {}]
  %s8 = sld [smem:[#allocation0]]
  $region50: #{tpu_custom_call.1} parent=0
    _
  %s10 = ssub.s32 1, %s8
  %s11 = scalar_select 0, %s10, %s8
  $region1: #{tpu_custom_call.1} parent=0
    #allocation2 [shape = 'u8[2048]{0}', space=vmem, size = 0x800, scoped, tag = 'input window, operand 0, single buffered']
    #allocation3 [shape = 's32[1]{0}', space=sflag, size = 0x4, scoped, tag = 'scoped memory for tpu_custom_call.1']
    #allocation4 [shape = 's32[1]{0}', space=sflag, size = 0x4, scoped, tag = 'scoped memory for tpu_custom_call.1']
    #allocation5 [shape = 'u8[131072]{0}', space=vmem, size = 0x20000, scoped, tag = 'input window, operand 1, single buffered']
    #allocation6 [shape = 's32[1]{0}', space=sflag, size = 0x4, scoped, tag = 'scoped memory for tpu_custom_call.1']
    #allocation7 [shape = 'u8[262144]{0}', space=vmem, size = 0x40000, scoped, tag = 'input window, operand 4, single buffered']
    #allocation8 [shape = 'u8[4096]{0}', space=vmem, size = 0x1000, scoped, tag = 'output window, operand 0, single buffered']
    %12 = vsyncpa [#allocation3], 0
    %13 = vsyncpa [#allocation6], 0
    %14 = vsyncpa [#allocation4], 0
    // Predicated region
    $region2: #{tpu_custom_call.1} parent=1 // pred_check
      _
    $region3: #{tpu_custom_call.1} parent=1 // pred_check_branch
      %16 = sbr.rel (0) target = $region5
    $region4: #{tpu_custom_call.1} parent=1 // pred_region
      %s18 = ssub.s32 64, 64
      %19 = vsyncadd [#allocation3], %s18
      %s21 = sshll.u32 [#allocation2], 4
      %s22 = int_to_ptr.vmem [resolvable:$true] %s21
      %24 = dma.hbm_to_vmem [thread:$0]  %s0, 64, %s22, [#allocation3]
    $region5: #{tpu_custom_call.1} parent=1 // pred_fallthru
      _
    // Predicated region
    $region6: #{tpu_custom_call.1} parent=1 // pred_check
      _
    $region7: #{tpu_custom_call.1} parent=1 // pred_check_branch
      %26 = sbr.rel (0) target = $region9
    $region8: #{tpu_custom_call.1} parent=1 // pred_region
      %s28 = ssub.s32 4096, 4096
      %29 = vsyncadd [#allocation6], %s28
      %s30 = sshll.u32 [#allocation5], 4
      %s31 = int_to_ptr.vmem [resolvable:$true] %s30
      %36 = dma.hbm_to_vmem [thread:$0]  %s1, 4096, %s31, [#allocation6], 256, 256, 16
    $region9: #{tpu_custom_call.1} parent=1 // pred_fallthru
      _
    // Predicated region
    $region10: #{tpu_custom_call.1} parent=1 // pred_check
      _
    $region11: #{tpu_custom_call.1} parent=1 // pred_check_branch
      %38 = sbr.rel (0) target = $region13
    $region12: #{tpu_custom_call.1} parent=1 // pred_region
      _
    $region13: #{tpu_custom_call.1} parent=1 // pred_fallthru
      _
    // Predicated region
    $region14: #{tpu_custom_call.1} parent=1 // pred_check
      _
    $region15: #{tpu_custom_call.1} parent=1 // pred_check_branch
      %40 = sbr.rel (0) target = $region17
    $region16: #{tpu_custom_call.1} parent=1 // pred_region
      _
    $region17: #{tpu_custom_call.1} parent=1 // pred_fallthru
      _
    // Predicated region
    $region18: #{tpu_custom_call.1} parent=1 // pred_check
      _
    $region19: #{tpu_custom_call.1} parent=1 // pred_check_branch
      %42 = sbr.rel (0) target = $region21
    $region20: #{tpu_custom_call.1} parent=1 // pred_region
      %s44 = ssub.s32 8192, 8192
      %45 = vsyncadd [#allocation6], %s44
      %s46 = sshll.u32 [#allocation7], 4
      %s47 = int_to_ptr.vmem [resolvable:$true] %s46
      %52 = dma.hbm_to_vmem [thread:$0]  %s4, 8192, %s47, [#allocation6], 128, 128, 8
    $region21: #{tpu_custom_call.1} parent=1 // pred_fallthru
      _
    // Predicated region
    $region22: #{tpu_custom_call.1} parent=1 // pred_check
      _
    $region23: #{tpu_custom_call.1} parent=1 // pred_check_branch
      %54 = sbr.rel (0) target = $region25
    $region24: #{tpu_custom_call.1} parent=1 // pred_region
      _
    $region25: #{tpu_custom_call.1} parent=1 // pred_fallthru
      _
    // Predicated region
    $region26: #{tpu_custom_call.1} parent=1 // pred_check
      _
    $region27: #{tpu_custom_call.1} parent=1 // pred_check_branch
      %56 = sbr.rel (0) target = $region29
    $region28: #{tpu_custom_call.1} parent=1 // pred_region
      _
    $region29: #{tpu_custom_call.1} parent=1 // pred_fallthru
      _
    // Predicated region
    $region30: #{tpu_custom_call.1} parent=1 // pred_check
      _
    $region31: #{tpu_custom_call.1} parent=1 // pred_check_branch
      %58 = sbr.rel (0) target = $region33
    $region32: #{tpu_custom_call.1} parent=1 // pred_region
      %59 = dma.done [#allocation3], 64
    $region33: #{tpu_custom_call.1} parent=1 // pred_fallthru
      _
    // Predicated region
    $region34: #{tpu_custom_call.1} parent=1 // pred_check
      _
    $region35: #{tpu_custom_call.1} parent=1 // pred_check_branch
      %61 = sbr.rel (0) target = $region37
    $region36: #{tpu_custom_call.1} parent=1 // pred_region
      %62 = dma.done [#allocation6], 4096
    $region37: #{tpu_custom_call.1} parent=1 // pred_fallthru
      _
    // Predicated region
    $region38: #{tpu_custom_call.1} parent=1 // pred_check
      _
    $region39: #{tpu_custom_call.1} parent=1 // pred_check_branch
      %64 = sbr.rel (0) target = $region41
    $region40: #{tpu_custom_call.1} parent=1 // pred_region
      %65 = dma.done [#allocation6], 8192
    $region41: #{tpu_custom_call.1} parent=1 // pred_fallthru
      _
    %v67 = vld [vmem:[#allocation2] sm:$0xf]
    %v68 = vld [vmem:[#allocation5] sm:$0xff]
    %v69 = vld [vmem:[#allocation5 + $0x8] sm:$0xff]
    %v70 = vld [vmem:[#allocation5 + $0x10] sm:$0xff]
    %v71 = vld [vmem:[#allocation5 + $0x18] sm:$0xff]
    %v72 = vld [vmem:[#allocation5 + $0x20] sm:$0xff]
    %v73 = vld [vmem:[#allocation5 + $0x28] sm:$0xff]
    %v74 = vld [vmem:[#allocation5 + $0x30] sm:$0xff]
    %v75 = vld [vmem:[#allocation5 + $0x38] sm:$0xff]
    %v76 = vld [vmem:[#allocation5 + $0x40] sm:$0xff]
    %v77 = vld [vmem:[#allocation5 + $0x48] sm:$0xff]
    %v78 = vld [vmem:[#allocation5 + $0x50] sm:$0xff]
    %v79 = vld [vmem:[#allocation5 + $0x58] sm:$0xff]
    %v80 = vld [vmem:[#allocation5 + $0x60] sm:$0xff]
    %v81 = vld [vmem:[#allocation5 + $0x68] sm:$0xff]
    %v82 = vld [vmem:[#allocation5 + $0x70] sm:$0xff]
    %v83 = vld [vmem:[#allocation5 + $0x78] sm:$0xff]
    %v84 = vld [vmem:[#allocation5 + $0x80] sm:$0xff]
    %v85 = vld [vmem:[#allocation5 + $0x88] sm:$0xff]
    %v86 = vld [vmem:[#allocation5 + $0x90] sm:$0xff]
    %v87 = vld [vmem:[#allocation5 + $0x98] sm:$0xff]
    %v88 = vld [vmem:[#allocation5 + $0xa0] sm:$0xff]
    %v89 = vld [vmem:[#allocation5 + $0xa8] sm:$0xff]
    %v90 = vld [vmem:[#allocation5 + $0xb0] sm:$0xff]
    %v91 = vld [vmem:[#allocation5 + $0xb8] sm:$0xff]
    %v92 = vld [vmem:[#allocation5 + $0xc0] sm:$0xff]
    %v93 = vld [vmem:[#allocation5 + $0xc8] sm:$0xff]
    %v94 = vld [vmem:[#allocation5 + $0xd0] sm:$0xff]
    %v95 = vld [vmem:[#allocation5 + $0xd8] sm:$0xff]
    %v96 = vld [vmem:[#allocation5 + $0xe0] sm:$0xff]
    %v97 = vld [vmem:[#allocation5 + $0xe8] sm:$0xff]
    %v98 = vld [vmem:[#allocation5 + $0xf0] sm:$0xff]
    %v99 = vld [vmem:[#allocation5 + $0xf8] sm:$0xff]
    %v132 = vunpack.c.l.b16 %v68
    %v133 = vunpack.c.h.b16 %v68
    %v134 = vunpack.c.l.b16 %v69
    %v135 = vunpack.c.h.b16 %v69
    %v136 = vunpack.c.l.b16 %v70
    %v137 = vunpack.c.h.b16 %v70
    %v138 = vunpack.c.l.b16 %v71
    %v139 = vunpack.c.h.b16 %v71
    %v140 = vunpack.c.l.b16 %v72
    %v141 = vunpack.c.h.b16 %v72
    %v142 = vunpack.c.l.b16 %v73
    %v143 = vunpack.c.h.b16 %v73
    %v144 = vunpack.c.l.b16 %v74
    %v145 = vunpack.c.h.b16 %v74
    %v146 = vunpack.c.l.b16 %v75
    %v147 = vunpack.c.h.b16 %v75
    %v148 = vunpack.c.l.b16 %v76
    %v149 = vunpack.c.h.b16 %v76
    %v150 = vunpack.c.l.b16 %v77
    %v151 = vunpack.c.h.b16 %v77
    %v152 = vunpack.c.l.b16 %v78
    %v153 = vunpack.c.h.b16 %v78
    %v154 = vunpack.c.l.b16 %v79
    %v155 = vunpack.c.h.b16 %v79
    %v156 = vunpack.c.l.b16 %v80
    %v157 = vunpack.c.h.b16 %v80
    %v158 = vunpack.c.l.b16 %v81
    %v159 = vunpack.c.h.b16 %v81
    %v160 = vunpack.c.l.b16 %v82
    %v161 = vunpack.c.h.b16 %v82
    %v162 = vunpack.c.l.b16 %v83
    %v163 = vunpack.c.h.b16 %v83
    %v164 = vunpack.c.l.b16 %v84
    %v165 = vunpack.c.h.b16 %v84
    %v166 = vunpack.c.l.b16 %v85
    %v167 = vunpack.c.h.b16 %v85
    %v168 = vunpack.c.l.b16 %v86
    %v169 = vunpack.c.h.b16 %v86
    %v170 = vunpack.c.l.b16 %v87
    %v171 = vunpack.c.h.b16 %v87
    %v172 = vunpack.c.l.b16 %v88
    %v173 = vunpack.c.h.b16 %v88
    %v174 = vunpack.c.l.b16 %v89
    %v175 = vunpack.c.h.b16 %v89
    %v176 = vunpack.c.l.b16 %v90
    %v177 = vunpack.c.h.b16 %v90
    %v178 = vunpack.c.l.b16 %v91
    %v179 = vunpack.c.h.b16 %v91
    %v180 = vunpack.c.l.b16 %v92
    %v181 = vunpack.c.h.b16 %v92
    %v182 = vunpack.c.l.b16 %v93
    %v183 = vunpack.c.h.b16 %v93
    %v184 = vunpack.c.l.b16 %v94
    %v185 = vunpack.c.h.b16 %v94
    %v186 = vunpack.c.l.b16 %v95
    %v187 = vunpack.c.h.b16 %v95
    %v188 = vunpack.c.l.b16 %v96
    %v189 = vunpack.c.h.b16 %v96
    %v190 = vunpack.c.l.b16 %v97
    %v191 = vunpack.c.h.b16 %v97
    %v192 = vunpack.c.l.b16 %v98
    %v193 = vunpack.c.h.b16 %v98
    %v194 = vunpack.c.l.b16 %v99
    %v195 = vunpack.c.h.b16 %v99
    %v196 = vpack.c.b16 %v136, %v132
    %v197 = vpack.c.b16 %v137, %v133
    %v198 = vpack.c.b16 %v138, %v134
    %v199 = vpack.c.b16 %v139, %v135
    %v200 = vpack.c.b16 %v144, %v140
    %v201 = vpack.c.b16 %v145, %v141
    %v202 = vpack.c.b16 %v146, %v142
    %v203 = vpack.c.b16 %v147, %v143
    %v204 = vpack.c.b16 %v152, %v148
    %v205 = vpack.c.b16 %v153, %v149
    %v206 = vpack.c.b16 %v154, %v150
    %v207 = vpack.c.b16 %v155, %v151
    %v208 = vpack.c.b16 %v160, %v156
    %v209 = vpack.c.b16 %v161, %v157
    %v210 = vpack.c.b16 %v162, %v158
    %v211 = vpack.c.b16 %v163, %v159
    %v212 = vpack.c.b16 %v168, %v164
    %v213 = vpack.c.b16 %v169, %v165
    %v214 = vpack.c.b16 %v170, %v166
    %v215 = vpack.c.b16 %v171, %v167
    %v216 = vpack.c.b16 %v176, %v172
    %v217 = vpack.c.b16 %v177, %v173
    %v218 = vpack.c.b16 %v178, %v174
    %v219 = vpack.c.b16 %v179, %v175
    %v220 = vpack.c.b16 %v184, %v180
    %v221 = vpack.c.b16 %v185, %v181
    %v222 = vpack.c.b16 %v186, %v182
    %v223 = vpack.c.b16 %v187, %v183
    %v224 = vpack.c.b16 %v192, %v188
    %v225 = vpack.c.b16 %v193, %v189
    %v226 = vpack.c.b16 %v194, %v190
    %v227 = vpack.c.b16 %v195, %v191
    %260 = vmatprep.subr.bf16.mxu0 %v197
    %261 = vmatpush1.bf16.msra.mxu0 %v196
    %262 = vmatprep.subr.bf16.mxu0 %v201
    %263 = vmatpush1.bf16.msra.mxu0 %v200
    %264 = vmatprep.subr.bf16.mxu0 %v205
    %265 = vmatpush1.bf16.msra.mxu0 %v204
    %266 = vmatprep.subr.bf16.mxu0 %v209
    %267 = vmatpush1.bf16.msra.mxu0 %v208
    %268 = vmatprep.subr.bf16.mxu0 %v213
    %269 = vmatpush1.bf16.msra.mxu0 %v212
    %270 = vmatprep.subr.bf16.mxu0 %v217
    %271 = vmatpush1.bf16.msra.mxu0 %v216
    %272 = vmatprep.subr.bf16.mxu0 %v221
    %273 = vmatpush1.bf16.msra.mxu0 %v220
    %274 = vmatprep.subr.bf16.mxu0 %v225
    %275 = vmatpush1.bf16.msra.mxu0 %v224
    %276 = vmatprep.subr.bf16.mxu0 0
    %277 = vmatpush1.bf16.msra.mxu0 0
    %278 = vmatprep.subr.bf16.mxu0 0
    %279 = vmatpush1.bf16.msra.mxu0 0
    %280 = vmatprep.subr.bf16.mxu0 0
    %281 = vmatpush1.bf16.msra.mxu0 0
    %282 = vmatprep.subr.bf16.mxu0 0
    %283 = vmatpush1.bf16.msra.mxu0 0
    %284 = vmatprep.subr.bf16.mxu0 0
    %285 = vmatpush1.bf16.msra.mxu0 0
    %286 = vmatprep.subr.bf16.mxu0 0
    %287 = vmatpush1.bf16.msra.mxu0 0
    %288 = vmatprep.subr.bf16.mxu0 0
    %289 = vmatpush1.bf16.msra.mxu0 0
    %290 = vmatprep.subr.bf16.mxu0 0
    %291 = vmatpush1.bf16.msra.mxu0 0
    %292 = vmatprep.mubr.bf16.mxu0 0
    %293 = vmatmul.mubr.bf16.gmra.mrb[0].mxu0 %v67
    %v294 = vpop.f32.mrb[0].mxu0
    %v295 = vadd.f32 0.0, %v294
    %v296 = vpop.f32.mrb[0].mxu0
    %v297 = vadd.f32 0.0, %v296
    %v298 = vpop.f32.mrb[0].mxu0
    %v299 = vpop.f32.mrb[0].mxu0
    %300 = vdwg.mxu0
    %301 = vmatprep.subr.bf16.mxu0 %v199
    %302 = vmatpush1.bf16.msra.mxu0 %v198
    %303 = vmatprep.subr.bf16.mxu0 %v203
    %304 = vmatpush1.bf16.msra.mxu0 %v202
    %305 = vmatprep.subr.bf16.mxu0 %v207
    %306 = vmatpush1.bf16.msra.mxu0 %v206
    %307 = vmatprep.subr.bf16.mxu0 %v211
    %308 = vmatpush1.bf16.msra.mxu0 %v210
    %309 = vmatprep.subr.bf16.mxu0 %v215
    %310 = vmatpush1.bf16.msra.mxu0 %v214
    %311 = vmatprep.subr.bf16.mxu0 %v219
    %312 = vmatpush1.bf16.msra.mxu0 %v218
    %313 = vmatprep.subr.bf16.mxu0 %v223
    %314 = vmatpush1.bf16.msra.mxu0 %v222
    %315 = vmatprep.subr.bf16.mxu0 %v227
    %316 = vmatpush1.bf16.msra.mxu0 %v226
    %317 = vmatprep.subr.bf16.mxu0 0
    %318 = vmatpush1.bf16.msra.mxu0 0
    %319 = vmatprep.subr.bf16.mxu0 0
    %320 = vmatpush1.bf16.msra.mxu0 0
    %321 = vmatprep.subr.bf16.mxu0 0
    %322 = vmatpush1.bf16.msra.mxu0 0
    %323 = vmatprep.subr.bf16.mxu0 0
    %324 = vmatpush1.bf16.msra.mxu0 0
    %325 = vmatprep.subr.bf16.mxu0 0
    %326 = vmatpush1.bf16.msra.mxu0 0
    %327 = vmatprep.subr.bf16.mxu0 0
    %328 = vmatpush1.bf16.msra.mxu0 0
    %329 = vmatprep.subr.bf16.mxu0 0
    %330 = vmatpush1.bf16.msra.mxu0 0
    %331 = vmatprep.subr.bf16.mxu0 0
    %332 = vmatpush1.bf16.msra.mxu0 0
    %333 = vmatprep.mubr.bf16.mxu0 0
    %334 = vmatmul.mubr.bf16.gmra.mrb[0].mxu0 %v67
    %v335 = vpop.f32.mrb[0].mxu0
    %v336 = vadd.f32 0.0, %v335
    %v337 = vpop.f32.mrb[0].mxu0
    %v338 = vadd.f32 0.0, %v337
    %v339 = vpop.f32.mrb[0].mxu0
    %v340 = vpop.f32.mrb[0].mxu0
    %341 = vdwg.mxu0
    %v342 = vld [vmem:[%s2] sm:$0xf]
    %v344 = vlaneseq
    %v345 = vshrl.u32 %v344, 7
    %v346 = vsub.s32 0, %v345
    %v347 = vrot.slane %v342, %v346
    %v348 = vlaneseq
    %v349 = vshrl.u32 %v348, 7
    %v350 = vsub.s32 1, %v349
    %v351 = vrot.slane %v342, %v350
    %v352 = vlaneseq
    %v353 = vshrl.u32 %v352, 7
    %v354 = vsub.s32 2, %v353
    %v355 = vrot.slane %v342, %v354
    %v356 = vlaneseq
    %v357 = vshrl.u32 %v356, 7
    %v358 = vsub.s32 3, %v357
    %v359 = vrot.slane %v342, %v358
    %v364 = vmul.f32 %v295, %v347
    %v365 = vmul.f32 %v297, %v351
    %v366 = vmul.f32 %v336, %v355
    %v367 = vmul.f32 %v338, %v359
    %v368 = vld [vmem:[%s3] sm:$0xf]
    %v370 = vlaneseq
    %v371 = vshrl.u32 %v370, 7
    %v372 = vsub.s32 0, %v371
    %v373 = vrot.slane %v368, %v372
    %v374 = vlaneseq
    %v375 = vshrl.u32 %v374, 7
    %v376 = vsub.s32 1, %v375
    %v377 = vrot.slane %v368, %v376
    %v378 = vlaneseq
    %v379 = vshrl.u32 %v378, 7
    %v380 = vsub.s32 2, %v379
    %v381 = vrot.slane %v368, %v380
    %v382 = vlaneseq
    %v383 = vshrl.u32 %v382, 7
    %v384 = vsub.s32 3, %v383
    %v385 = vrot.slane %v368, %v384
    %v390 = vadd.f32 %v364, %v373
    %v391 = vadd.f32 %v365, %v377
    %v392 = vadd.f32 %v366, %v381
    %v393 = vadd.f32 %v367, %v385
    %vm394 = vcmp.gt.f32.partialorder %v390, 0.0
    %vm395 = vcmp.gt.f32.partialorder %v391, 0.0
    %vm396 = vcmp.gt.f32.partialorder %v392, 0.0
    %vm397 = vcmp.gt.f32.partialorder %v393, 0.0
    %v398 = vmul.f32 %v390, 0.01
    %v399 = vmul.f32 %v391, 0.01
    %v400 = vmul.f32 %v392, 0.01
    %v401 = vmul.f32 %v393, 0.01
    %v402 = vsel %vm394, %v390, %v398
    %v403 = vsel %vm395, %v391, %v399
    %v404 = vsel %vm396, %v392, %v400
    %v405 = vsel %vm397, %v393, %v401
    %v406 = vpack.c.bf16 %v402, %v402
    %v407 = vpack.c.bf16 %v403, %v403
    %v408 = vpack.c.bf16 %v404, %v404
    %v409 = vpack.c.bf16 %v405, %v405
    %v410 = vld [vmem:[#allocation7] sm:$0xff]
    %v411 = vld [vmem:[#allocation7 + $0x8] sm:$0xff]
    %v412 = vld [vmem:[#allocation7 + $0x10] sm:$0xff]
    %v413 = vld [vmem:[#allocation7 + $0x18] sm:$0xff]
    %v414 = vld [vmem:[#allocation7 + $0x20] sm:$0xff]
    %v415 = vld [vmem:[#allocation7 + $0x28] sm:$0xff]
    %v416 = vld [vmem:[#allocation7 + $0x30] sm:$0xff]
    %v417 = vld [vmem:[#allocation7 + $0x38] sm:$0xff]
    %v418 = vld [vmem:[#allocation7 + $0x40] sm:$0xff]
    %v419 = vld [vmem:[#allocation7 + $0x48] sm:$0xff]
    %v420 = vld [vmem:[#allocation7 + $0x50] sm:$0xff]
    %v421 = vld [vmem:[#allocation7 + $0x58] sm:$0xff]
    %v422 = vld [vmem:[#allocation7 + $0x60] sm:$0xff]
    %v423 = vld [vmem:[#allocation7 + $0x68] sm:$0xff]
    %v424 = vld [vmem:[#allocation7 + $0x70] sm:$0xff]
    %v425 = vld [vmem:[#allocation7 + $0x78] sm:$0xff]
    %v426 = vld [vmem:[#allocation7 + $0x80] sm:$0xff]
    %v427 = vld [vmem:[#allocation7 + $0x88] sm:$0xff]
    %v428 = vld [vmem:[#allocation7 + $0x90] sm:$0xff]
    %v429 = vld [vmem:[#allocation7 + $0x98] sm:$0xff]
    %v430 = vld [vmem:[#allocation7 + $0xa0] sm:$0xff]
    %v431 = vld [vmem:[#allocation7 + $0xa8] sm:$0xff]
    %v432 = vld [vmem:[#allocation7 + $0xb0] sm:$0xff]
    %v433 = vld [vmem:[#allocation7 + $0xb8] sm:$0xff]
    %v434 = vld [vmem:[#allocation7 + $0xc0] sm:$0xff]
    %v435 = vld [vmem:[#allocation7 + $0xc8] sm:$0xff]
    %v436 = vld [vmem:[#allocation7 + $0xd0] sm:$0xff]
    %v437 = vld [vmem:[#allocation7 + $0xd8] sm:$0xff]
    %v438 = vld [vmem:[#allocation7 + $0xe0] sm:$0xff]
    %v439 = vld [vmem:[#allocation7 + $0xe8] sm:$0xff]
    %v440 = vld [vmem:[#allocation7 + $0xf0] sm:$0xff]
    %v441 = vld [vmem:[#allocation7 + $0xf8] sm:$0xff]
    %v442 = vld [vmem:[#allocation7 + $0x100] sm:$0xff]
    %v443 = vld [vmem:[#allocation7 + $0x108] sm:$0xff]
    %v444 = vld [vmem:[#allocation7 + $0x110] sm:$0xff]
    %v445 = vld [vmem:[#allocation7 + $0x118] sm:$0xff]
    %v446 = vld [vmem:[#allocation7 + $0x120] sm:$0xff]
    %v447 = vld [vmem:[#allocation7 + $0x128] sm:$0xff]
    %v448 = vld [vmem:[#allocation7 + $0x130] sm:$0xff]
    %v449 = vld [vmem:[#allocation7 + $0x138] sm:$0xff]
    %v450 = vld [vmem:[#allocation7 + $0x140] sm:$0xff]
    %v451 = vld [vmem:[#allocation7 + $0x148] sm:$0xff]
    %v452 = vld [vmem:[#allocation7 + $0x150] sm:$0xff]
    %v453 = vld [vmem:[#allocation7 + $0x158] sm:$0xff]
    %v454 = vld [vmem:[#allocation7 + $0x160] sm:$0xff]
    %v455 = vld [vmem:[#allocation7 + $0x168] sm:$0xff]
    %v456 = vld [vmem:[#allocation7 + $0x170] sm:$0xff]
    %v457 = vld [vmem:[#allocation7 + $0x178] sm:$0xff]
    %v458 = vld [vmem:[#allocation7 + $0x180] sm:$0xff]
    %v459 = vld [vmem:[#allocation7 + $0x188] sm:$0xff]
    %v460 = vld [vmem:[#allocation7 + $0x190] sm:$0xff]
    %v461 = vld [vmem:[#allocation7 + $0x198] sm:$0xff]
    %v462 = vld [vmem:[#allocation7 + $0x1a0] sm:$0xff]
    %v463 = vld [vmem:[#allocation7 + $0x1a8] sm:$0xff]
    %v464 = vld [vmem:[#allocation7 + $0x1b0] sm:$0xff]
    %v465 = vld [vmem:[#allocation7 + $0x1b8] sm:$0xff]
    %v466 = vld [vmem:[#allocation7 + $0x1c0] sm:$0xff]
    %v467 = vld [vmem:[#allocation7 + $0x1c8] sm:$0xff]
    %v468 = vld [vmem:[#allocation7 + $0x1d0] sm:$0xff]
    %v469 = vld [vmem:[#allocation7 + $0x1d8] sm:$0xff]
    %v470 = vld [vmem:[#allocation7 + $0x1e0] sm:$0xff]
    %v471 = vld [vmem:[#allocation7 + $0x1e8] sm:$0xff]
    %v472 = vld [vmem:[#allocation7 + $0x1f0] sm:$0xff]
    %v473 = vld [vmem:[#allocation7 + $0x1f8] sm:$0xff]
    %v538 = vunpack.c.l.b16 %v410
    %v539 = vunpack.c.h.b16 %v410
    %v540 = vunpack.c.l.b16 %v411
    %v541 = vunpack.c.h.b16 %v411
    %v542 = vunpack.c.l.b16 %v412
    %v543 = vunpack.c.h.b16 %v412
    %v544 = vunpack.c.l.b16 %v413
    %v545 = vunpack.c.h.b16 %v413
    %v546 = vunpack.c.l.b16 %v414
    %v547 = vunpack.c.h.b16 %v414
    %v548 = vunpack.c.l.b16 %v415
    %v549 = vunpack.c.h.b16 %v415
    %v550 = vunpack.c.l.b16 %v416
    %v551 = vunpack.c.h.b16 %v416
    %v552 = vunpack.c.l.b16 %v417
    %v553 = vunpack.c.h.b16 %v417
    %v554 = vunpack.c.l.b16 %v418
    %v555 = vunpack.c.h.b16 %v418
    %v556 = vunpack.c.l.b16 %v419
    %v557 = vunpack.c.h.b16 %v419
    %v558 = vunpack.c.l.b16 %v420
    %v559 = vunpack.c.h.b16 %v420
    %v560 = vunpack.c.l.b16 %v421
    %v561 = vunpack.c.h.b16 %v421
    %v562 = vunpack.c.l.b16 %v422
    %v563 = vunpack.c.h.b16 %v422
    %v564 = vunpack.c.l.b16 %v423
    %v565 = vunpack.c.h.b16 %v423
    %v566 = vunpack.c.l.b16 %v424
    %v567 = vunpack.c.h.b16 %v424
    %v568 = vunpack.c.l.b16 %v425
    %v569 = vunpack.c.h.b16 %v425
    %v570 = vunpack.c.l.b16 %v426
    %v571 = vunpack.c.h.b16 %v426
    %v572 = vunpack.c.l.b16 %v427
    %v573 = vunpack.c.h.b16 %v427
    %v574 = vunpack.c.l.b16 %v428
    %v575 = vunpack.c.h.b16 %v428
    %v576 = vunpack.c.l.b16 %v429
    %v577 = vunpack.c.h.b16 %v429
    %v578 = vunpack.c.l.b16 %v430
    %v579 = vunpack.c.h.b16 %v430
    %v580 = vunpack.c.l.b16 %v431
    %v581 = vunpack.c.h.b16 %v431
    %v582 = vunpack.c.l.b16 %v432
    %v583 = vunpack.c.h.b16 %v432
    %v584 = vunpack.c.l.b16 %v433
    %v585 = vunpack.c.h.b16 %v433
    %v586 = vunpack.c.l.b16 %v434
    %v587 = vunpack.c.h.b16 %v434
    %v588 = vunpack.c.l.b16 %v435
    %v589 = vunpack.c.h.b16 %v435
    %v590 = vunpack.c.l.b16 %v436
    %v591 = vunpack.c.h.b16 %v436
    %v592 = vunpack.c.l.b16 %v437
    %v593 = vunpack.c.h.b16 %v437
    %v594 = vunpack.c.l.b16 %v438
    %v595 = vunpack.c.h.b16 %v438
    %v596 = vunpack.c.l.b16 %v439
    %v597 = vunpack.c.h.b16 %v439
    %v598 = vunpack.c.l.b16 %v440
    %v599 = vunpack.c.h.b16 %v440
    %v600 = vunpack.c.l.b16 %v441
    %v601 = vunpack.c.h.b16 %v441
    %v602 = vunpack.c.l.b16 %v442
    %v603 = vunpack.c.h.b16 %v442
    %v604 = vunpack.c.l.b16 %v443
    %v605 = vunpack.c.h.b16 %v443
    %v606 = vunpack.c.l.b16 %v444
    %v607 = vunpack.c.h.b16 %v444
    %v608 = vunpack.c.l.b16 %v445
    %v609 = vunpack.c.h.b16 %v445
    %v610 = vunpack.c.l.b16 %v446
    %v611 = vunpack.c.h.b16 %v446
    %v612 = vunpack.c.l.b16 %v447
    %v613 = vunpack.c.h.b16 %v447
    %v614 = vunpack.c.l.b16 %v448
    %v615 = vunpack.c.h.b16 %v448
    %v616 = vunpack.c.l.b16 %v449
    %v617 = vunpack.c.h.b16 %v449
    %v618 = vunpack.c.l.b16 %v450
    %v619 = vunpack.c.h.b16 %v450
    %v620 = vunpack.c.l.b16 %v451
    %v621 = vunpack.c.h.b16 %v451
    %v622 = vunpack.c.l.b16 %v452
    %v623 = vunpack.c.h.b16 %v452
    %v624 = vunpack.c.l.b16 %v453
    %v625 = vunpack.c.h.b16 %v453
    %v626 = vunpack.c.l.b16 %v454
    %v627 = vunpack.c.h.b16 %v454
    %v628 = vunpack.c.l.b16 %v455
    %v629 = vunpack.c.h.b16 %v455
    %v630 = vunpack.c.l.b16 %v456
    %v631 = vunpack.c.h.b16 %v456
    %v632 = vunpack.c.l.b16 %v457
    %v633 = vunpack.c.h.b16 %v457
    %v634 = vunpack.c.l.b16 %v458
    %v635 = vunpack.c.h.b16 %v458
    %v636 = vunpack.c.l.b16 %v459
    %v637 = vunpack.c.h.b16 %v459
    %v638 = vunpack.c.l.b16 %v460
    %v639 = vunpack.c.h.b16 %v460
    %v640 = vunpack.c.l.b16 %v461
    %v641 = vunpack.c.h.b16 %v461
    %v642 = vunpack.c.l.b16 %v462
    %v643 = vunpack.c.h.b16 %v462
    %v644 = vunpack.c.l.b16 %v463
    %v645 = vunpack.c.h.b16 %v463
    %v646 = vunpack.c.l.b16 %v464
    %v647 = vunpack.c.h.b16 %v464
    %v648 = vunpack.c.l.b16 %v465
    %v649 = vunpack.c.h.b16 %v465
    %v650 = vunpack.c.l.b16 %v466
    %v651 = vunpack.c.h.b16 %v466
    %v652 = vunpack.c.l.b16 %v467
    %v653 = vunpack.c.h.b16 %v467
    %v654 = vunpack.c.l.b16 %v468
    %v655 = vunpack.c.h.b16 %v468
    %v656 = vunpack.c.l.b16 %v469
    %v657 = vunpack.c.h.b16 %v469
    %v658 = vunpack.c.l.b16 %v470
    %v659 = vunpack.c.h.b16 %v470
    %v660 = vunpack.c.l.b16 %v471
    %v661 = vunpack.c.h.b16 %v471
    %v662 = vunpack.c.l.b16 %v472
    %v663 = vunpack.c.h.b16 %v472
    %v664 = vunpack.c.l.b16 %v473
    %v665 = vunpack.c.h.b16 %v473
    %v666 = vpack.c.b16 %v540, %v538
    %v667 = vpack.c.b16 %v541, %v539
    %v668 = vpack.c.b16 %v544, %v542
    %v669 = vpack.c.b16 %v545, %v543
    %v670 = vpack.c.b16 %v548, %v546
    %v671 = vpack.c.b16 %v549, %v547
    %v672 = vpack.c.b16 %v552, %v550
    %v673 = vpack.c.b16 %v553, %v551
    %v674 = vpack.c.b16 %v556, %v554
    %v675 = vpack.c.b16 %v557, %v555
    %v676 = vpack.c.b16 %v560, %v558
    %v677 = vpack.c.b16 %v561, %v559
    %v678 = vpack.c.b16 %v564, %v562
    %v679 = vpack.c.b16 %v565, %v563
    %v680 = vpack.c.b16 %v568, %v566
    %v681 = vpack.c.b16 %v569, %v567
    %v682 = vpack.c.b16 %v572, %v570
    %v683 = vpack.c.b16 %v573, %v571
    %v684 = vpack.c.b16 %v576, %v574
    %v685 = vpack.c.b16 %v577, %v575
    %v686 = vpack.c.b16 %v580, %v578
    %v687 = vpack.c.b16 %v581, %v579
    %v688 = vpack.c.b16 %v584, %v582
    %v689 = vpack.c.b16 %v585, %v583
    %v690 = vpack.c.b16 %v588, %v586
    %v691 = vpack.c.b16 %v589, %v587
    %v692 = vpack.c.b16 %v592, %v590
    %v693 = vpack.c.b16 %v593, %v591
    %v694 = vpack.c.b16 %v596, %v594
    %v695 = vpack.c.b16 %v597, %v595
    %v696 = vpack.c.b16 %v600, %v598
    %v697 = vpack.c.b16 %v601, %v599
    %v698 = vpack.c.b16 %v604, %v602
    %v699 = vpack.c.b16 %v605, %v603
    %v700 = vpack.c.b16 %v608, %v606
    %v701 = vpack.c.b16 %v609, %v607
    %v702 = vpack.c.b16 %v612, %v610
    %v703 = vpack.c.b16 %v613, %v611
    %v704 = vpack.c.b16 %v616, %v614
    %v705 = vpack.c.b16 %v617, %v615
    %v706 = vpack.c.b16 %v620, %v618
    %v707 = vpack.c.b16 %v621, %v619
    %v708 = vpack.c.b16 %v624, %v622
    %v709 = vpack.c.b16 %v625, %v623
    %v710 = vpack.c.b16 %v628, %v626
    %v711 = vpack.c.b16 %v629, %v627
    %v712 = vpack.c.b16 %v632, %v630
    %v713 = vpack.c.b16 %v633, %v631
    %v714 = vpack.c.b16 %v636, %v634
    %v715 = vpack.c.b16 %v637, %v635
    %v716 = vpack.c.b16 %v640, %v638
    %v717 = vpack.c.b16 %v641, %v639
    %v718 = vpack.c.b16 %v644, %v642
    %v719 = vpack.c.b16 %v645, %v643
    %v720 = vpack.c.b16 %v648, %v646
    %v721 = vpack.c.b16 %v649, %v647
    %v722 = vpack.c.b16 %v652, %v650
    %v723 = vpack.c.b16 %v653, %v651
    %v724 = vpack.c.b16 %v656, %v654
    %v725 = vpack.c.b16 %v657, %v655
    %v726 = vpack.c.b16 %v660, %v658
    %v727 = vpack.c.b16 %v661, %v659
    %v728 = vpack.c.b16 %v664, %v662
    %v729 = vpack.c.b16 %v665, %v663
    %794 = vmatprep.subr.bf16.mxu0 %v667
    %795 = vmatpush1.bf16.msra.mxu0 %v666
    %796 = vmatprep.subr.bf16.mxu0 %v669
    %797 = vmatpush1.bf16.msra.mxu0 %v668
    %798 = vmatprep.subr.bf16.mxu0 %v671
    %799 = vmatpush1.bf16.msra.mxu0 %v670
    %800 = vmatprep.subr.bf16.mxu0 %v673
    %801 = vmatpush1.bf16.msra.mxu0 %v672
    %802 = vmatprep.subr.bf16.mxu0 %v675
    %803 = vmatpush1.bf16.msra.mxu0 %v674
    %804 = vmatprep.subr.bf16.mxu0 %v677
    %805 = vmatpush1.bf16.msra.mxu0 %v676
    %806 = vmatprep.subr.bf16.mxu0 %v679
    %807 = vmatpush1.bf16.msra.mxu0 %v678
    %808 = vmatprep.subr.bf16.mxu0 %v681
    %809 = vmatpush1.bf16.msra.mxu0 %v680
    %810 = vmatprep.subr.bf16.mxu0 %v683
    %811 = vmatpush1.bf16.msra.mxu0 %v682
    %812 = vmatprep.subr.bf16.mxu0 %v685
    %813 = vmatpush1.bf16.msra.mxu0 %v684
    %814 = vmatprep.subr.bf16.mxu0 %v687
    %815 = vmatpush1.bf16.msra.mxu0 %v686
    %816 = vmatprep.subr.bf16.mxu0 %v689
    %817 = vmatpush1.bf16.msra.mxu0 %v688
    %818 = vmatprep.subr.bf16.mxu0 %v691
    %819 = vmatpush1.bf16.msra.mxu0 %v690
    %820 = vmatprep.subr.bf16.mxu0 %v693
    %821 = vmatpush1.bf16.msra.mxu0 %v692
    %822 = vmatprep.subr.bf16.mxu0 %v695
    %823 = vmatpush1.bf16.msra.mxu0 %v694
    %824 = vmatprep.subr.bf16.mxu0 %v697
    %825 = vmatpush1.bf16.msra.mxu0 %v696
    %826 = vmatprep.mubr.bf16.mxu0 %v407
    %827 = vmatmul.mubr.bf16.gmra.mrb[0].mxu0 %v406
    %v828 = vpop.f32.mrb[0].mxu0
    %v829 = vadd.f32 0.0, %v828
    %v830 = vpop.f32.mrb[0].mxu0
    %v831 = vadd.f32 0.0, %v830
    %v832 = vpop.f32.mrb[0].mxu0
    %v833 = vpop.f32.mrb[0].mxu0
    %834 = vdwg.mxu0
    %835 = vmatprep.subr.bf16.mxu0 %v699
    %836 = vmatpush1.bf16.msra.mxu0 %v698
    %837 = vmatprep.subr.bf16.mxu0 %v701
    %838 = vmatpush1.bf16.msra.mxu0 %v700
    %839 = vmatprep.subr.bf16.mxu0 %v703
    %840 = vmatpush1.bf16.msra.mxu0 %v702
    %841 = vmatprep.subr.bf16.mxu0 %v705
    %842 = vmatpush1.bf16.msra.mxu0 %v704
    %843 = vmatprep.subr.bf16.mxu0 %v707
    %844 = vmatpush1.bf16.msra.mxu0 %v706
    %845 = vmatprep.subr.bf16.mxu0 %v709
    %846 = vmatpush1.bf16.msra.mxu0 %v708
    %847 = vmatprep.subr.bf16.mxu0 %v711
    %848 = vmatpush1.bf16.msra.mxu0 %v710
    %849 = vmatprep.subr.bf16.mxu0 %v713
    %850 = vmatpush1.bf16.msra.mxu0 %v712
    %851 = vmatprep.subr.bf16.mxu0 %v715
    %852 = vmatpush1.bf16.msra.mxu0 %v714
    %853 = vmatprep.subr.bf16.mxu0 %v717
    %854 = vmatpush1.bf16.msra.mxu0 %v716
    %855 = vmatprep.subr.bf16.mxu0 %v719
    %856 = vmatpush1.bf16.msra.mxu0 %v718
    %857 = vmatprep.subr.bf16.mxu0 %v721
    %858 = vmatpush1.bf16.msra.mxu0 %v720
    %859 = vmatprep.subr.bf16.mxu0 %v723
    %860 = vmatpush1.bf16.msra.mxu0 %v722
    %861 = vmatprep.subr.bf16.mxu0 %v725
    %862 = vmatpush1.bf16.msra.mxu0 %v724
    %863 = vmatprep.subr.bf16.mxu0 %v727
    %864 = vmatpush1.bf16.msra.mxu0 %v726
    %865 = vmatprep.subr.bf16.mxu0 %v729
    %866 = vmatpush1.bf16.msra.mxu0 %v728
    %867 = vmatprep.mubr.bf16.mxu0 %v409
    %868 = vmatmul.mubr.bf16.gmra.mrb[0].mxu0 %v408
    %v869 = vpop.f32.mrb[0].mxu0
    %v870 = vadd.f32 %v829, %v869
    %v871 = vpop.f32.mrb[0].mxu0
    %v872 = vadd.f32 %v831, %v871
    %v873 = vpop.f32.mrb[0].mxu0
    %v874 = vpop.f32.mrb[0].mxu0
    %875 = vdwg.mxu0
    %v876 = vld [vmem:[%s5] sm:$0x3]
    %v878 = vlaneseq
    %v879 = vshrl.u32 %v878, 7
    %v880 = vsub.s32 0, %v879
    %v881 = vrot.slane %v876, %v880
    %v882 = vlaneseq
    %v883 = vshrl.u32 %v882, 7
    %v884 = vsub.s32 1, %v883
    %v885 = vrot.slane %v876, %v884
    %v888 = vmul.f32 %v870, %v881
    %v889 = vmul.f32 %v872, %v885
    %v890 = vld [vmem:[%s6] sm:$0x3]
    %v892 = vlaneseq
    %v893 = vshrl.u32 %v892, 7
    %v894 = vsub.s32 0, %v893
    %v895 = vrot.slane %v890, %v894
    %v896 = vlaneseq
    %v897 = vshrl.u32 %v896, 7
    %v898 = vsub.s32 1, %v897
    %v899 = vrot.slane %v890, %v898
    %v902 = vadd.f32 %v888, %v895
    %v903 = vadd.f32 %v889, %v899
    %v904 = vpack.c.bf16 %v902, %v902
    %v905 = vpack.c.bf16 %v903, %v903
    %v908 = vunpack.c.l.b16 %v904
    %v909 = vunpack.c.l.b16 %v905
    %v910 = vpack.c.b16 %v909, %v908
    %912 = vst [vmem:[#allocation8] sm:$0xff] %v910
    // Predicated region
    $region42: #{tpu_custom_call.1} parent=1 // pred_check
      _
    $region43: #{tpu_custom_call.1} parent=1 // pred_check_branch
      %914 = sbr.rel (0) target = $region45
    $region44: #{tpu_custom_call.1} parent=1 // pred_region
      %s916 = ssub.s32 128, 128
      %917 = vsyncadd [#allocation4], %s916
      %s919 = sshll.u32 [#allocation8], 4
      %s920 = int_to_ptr.vmem [resolvable:$true] %s919
      %922 = dma.vmem_to_hbm [thread:$0]  %s920, 128, %s7, [#allocation4]
    $region45: #{tpu_custom_call.1} parent=1 // pred_fallthru
      _
    // Predicated region
    $region46: #{tpu_custom_call.1} parent=1 // pred_check
      _
    $region47: #{tpu_custom_call.1} parent=1 // pred_check_branch
      %924 = sbr.rel (0) target = $region49
    $region48: #{tpu_custom_call.1} parent=1 // pred_region
      %925 = dma.done [#allocation4], 128
    $region49: #{tpu_custom_call.1} parent=1 // pred_fallthru
      _
    %926 = vsyncpa [#allocation3], 1
    %927 = vsyncpa [#allocation6], 1
    %928 = vsyncpa [#allocation4], 1

</llo_original>
